<compile_context>
chip_gen: v6e
topology: v6e:2x2x1
jax: 0.10.0
libtpu: 0.0.40
codegen_flags: <defaults>
</compile_context>

<pallas_src>
import numpy as np
import jax
import jax.numpy as jnp
from jax import lax
from jax.experimental import pallas as pl
from jax.experimental.pallas import tpu as pltpu

COARSE_CLASSES = 5  # group size / divisor, as in the PyTorch module
LANES = 128
SUBLANES = 8


def _round_up(x, m):
    return (x + m - 1) // m * m


def _make_ice_kernel(B, TB):
    """B (true batch) and TB (batch tile) are static Python ints."""

    def kernel(yhat_ref, lab_ref, f2c_ref, out_ref):
        # yhat_ref: [TB, C]  logits in their native dtype (f32 or bf16)
        # lab_ref:  [TB, 2]  i32, col 0 = true fine label, col 1 = its coarse group
        # f2c_ref:  [1, C]   i32 fine -> coarse map
        # out_ref:  [1, 8, 128] f32 per-tile partial sum (broadcast)
        logits = yhat_ref[...].astype(jnp.float32)
        lab = lab_ref[...]
        f2c = f2c_ref[...]
        yf = lab[:, 0:1]
        yc = lab[:, 1:2]

        tb, c = logits.shape
        col = lax.broadcasted_iota(jnp.int32, (tb, c), 1)
        row = pl.program_id(0) * TB + lax.broadcasted_iota(jnp.int32, (tb, 1), 0)
        valid = row < B  # mask for the ragged last tile (no wrapper padding)

        S = jnp.logical_and(f2c == yc, valid)   # group membership, built in-register
        T = jnp.logical_and(col == yf, valid)   # true-class one-hot (T subset of S)

        neg_big = jnp.float32(-1e30)
        masked = jnp.where(S, logits, neg_big)

        # masked softmax over the group's classes (exp underflows to exactly 0
        # outside the group for any row that has at least one group member)
        m = jnp.max(masked, axis=1, keepdims=True)
        z = masked - m
        e = jnp.exp(z)
        denom = jnp.sum(e, axis=1, keepdims=True)                      # [TB, 1]
        e_true = jnp.sum(jnp.where(T, e, 0.0), axis=1, keepdims=True)  # [TB, 1]

        # denom * Yg_ = denom - e_true + 1e-7 * denom  (exact algebra)
        D = denom - e_true + jnp.float32(1e-7) * denom                 # [TB, 1]
        inv = pl.reciprocal(D, approx=False)                           # one reciprocal
        logD = jnp.log(D)                                              # per-row log only

        Px = e * inv
        logPx = z - logD                 # log-softmax identity; no full-width log
        comp = jnp.logical_xor(S, T)     # group members except the true class
        out = jnp.where(comp, Px * logPx, 0.0)

        partial = jnp.sum(out)
        out_ref[...] = partial * jnp.ones((1, SUBLANES, LANES), jnp.float32)

    return kernel


def inner_complement_entropy(yHat, y_fine, fine2coarse):
    """yHat: [B, C_fine] logits (f32 or bf16); y_fine: [B] int labels;
    fine2coarse: [C_fine] int map fine class -> coarse class."""
    B, C = yHat.shape
    y_fine = y_fine.astype(jnp.int32)
    fine2coarse = fine2coarse.astype(jnp.int32)

    # --- batch-tile selection: ~2 MiB f32-equivalent input block, VMEM-safe ---
    f32_row_bytes = _round_up(max(C, LANES), LANES) * 4
    tb = max(SUBLANES, ((2 << 20) // f32_row_bytes) // SUBLANES * SUBLANES)
    tb = min(tb, 4096)
    if B >= 4 * SUBLANES:
        # keep >= 4 grid steps so v7x's two TensorCores both get work
        tb = min(tb, _round_up(-(-B // 4), SUBLANES))
    if B <= SUBLANES:
        tb = B  # full-extent batch block (legal even when B % 8 != 0)
    else:
        tb = min(tb, _round_up(B, SUBLANES))
    num_tiles = -(-B // tb)

    # Tiny per-sample index columns (one merged [B,2] DMA) instead of masks.
    labels = jnp.stack([y_fine, fine2coarse[y_fine]], axis=1)  # [B, 2] i32
    f2c_row = fine2coarse.reshape(1, C)

    in_bytes = yHat.dtype.itemsize
    cost = pl.CostEstimate(
        flops=10 * B * C,
        transcendentals=B * C + 2 * B,  # exp over tile + per-row log/recip
        bytes_accessed=B * C * in_bytes + B * 8 + C * 4
        + num_tiles * SUBLANES * LANES * 4,
    )

    partials = pl.pallas_call(
        _make_ice_kernel(B, tb),
        out_shape=jax.ShapeDtypeStruct((num_tiles, SUBLANES, LANES), jnp.float32),
        grid=(num_tiles,),
        in_specs=[
            pl.BlockSpec((tb, C), lambda i: (i, 0)),   # full class extent: no col pad
            pl.BlockSpec((tb, 2), lambda i: (i, 0)),
            pl.BlockSpec((1, C), lambda i: (0, 0)),
        ],
        out_specs=pl.BlockSpec((1, SUBLANES, LANES), lambda i: (i, 0, 0)),
        compiler_params=pltpu.CompilerParams(
            dimension_semantics=("parallel",),
            # Double-buffered inputs + f32 intermediates; 48 MiB fits every
            # generation (v7x physical VMEM is 64 MiB).
            vmem_limit_bytes=48 * 1024 * 1024,
        ),
        cost_estimate=cost,
    )(yHat, labels, f2c_row)

    # Final tiny reduction + normalization outside the kernel.
    return jnp.sum(partials[:, 0, 0]) / jnp.float32(B * COARSE_CLASSES)


def _reference(yHat, y_fine, fine2coarse):
    """Pure-JAX reference mirroring the PyTorch forward."""
    yHat = yHat.astype(jnp.float32)
    B, C = yHat.shape
    y_coarse = fine2coarse[y_fine]
    S = fine2coarse[None, :] == y_coarse[:, None]
    T = jnp.arange(C)[None, :] == y_fine[:, None]
    masked = jnp.where(S, yHat, -jnp.inf)
    probs = jax.nn.softmax(masked, axis=1)
    probs = jnp.where(S, probs, 0.0)
    Yg = jnp.sum(jnp.where(T, probs, 0.0), axis=1, keepdims=True)
    Yg_ = 1.0 - Yg + 1e-7
    Px = probs / Yg_
    Px_log = jnp.log(jnp.maximum(Px, 1e-10))
    zerohot = S.astype(jnp.float32) - T.astype(jnp.float32)
    out = Px * Px_log * zerohot
    return jnp.sum(out) / (B * COARSE_CLASSES)


if __name__ == "__main__":
    # synthetic problem: 4 coarse groups x 5 fine classes each = 20 fine classes
    num_coarse = 4
    num_fine = num_coarse * COARSE_CLASSES
    batch = 8

    fine2coarse = jnp.asarray(
        np.repeat(np.arange(num_coarse, dtype=np.int32), COARSE_CLASSES)
    )

    key = jax.random.PRNGKey(0)
    k1, k2 = jax.random.split(key)
    yHat = jax.random.normal(k1, (batch, num_fine), dtype=jnp.float32)
    y_fine = jax.random.randint(k2, (batch,), 0, num_fine, dtype=jnp.int32)

    loss = jax.block_until_ready(inner_complement_entropy(yHat, y_fine, fine2coarse))
    ref = jax.block_until_ready(_reference(yHat, y_fine, fine2coarse))

    assert np.allclose(np.asarray(loss), np.asarray(ref), rtol=1e-5, atol=1e-5), (
        loss,
        ref,
    )
    print("KERNEL_OK")
</pallas_src>

<mosaic_0001>
module attributes {stable_mosaic.version = 11 : i64} {
  func.func @kernel(%arg0: i32, %arg1: memref<8x20xf32, #tpu.memory_space<vmem>>, %arg2: memref<8x2xi32, #tpu.memory_space<vmem>>, %arg3: memref<1x20xi32, #tpu.memory_space<vmem>>, %arg4: memref<1x8x128xf32, #tpu.memory_space<vmem>>) attributes {dimension_semantics = [#tpu.dimension_semantics<parallel>], iteration_bounds = array<i64: 1>, scalar_prefetch = 0 : i64, scratch_operands = 0 : i64, tpu.core_type = #tpu.core_type<tc>, window_params = [{transform_indices = @transform_0, window_bounds = array<i64: 8, 20>}, {transform_indices = @transform_1, window_bounds = array<i64: 8, 2>}, {pipeline_mode = #tpu.pipeline_mode<synchronous>, transform_indices = @transform_2, window_bounds = array<i64: 1, 20>}, {transform_indices = @transform_3, window_bounds = array<i64: 1, 8, 128>}]} {
    %c0 = arith.constant 0 : index
    %c0_0 = arith.constant 0 : index
    %0 = vector.load %arg1[%c0, %c0_0] : memref<8x20xf32, #tpu.memory_space<vmem>>, vector<8x20xf32>
    %c0_1 = arith.constant 0 : index
    %c0_2 = arith.constant 0 : index
    %1 = vector.load %arg2[%c0_1, %c0_2] : memref<8x2xi32, #tpu.memory_space<vmem>>, vector<8x2xi32>
    %c0_3 = arith.constant 0 : index
    %c0_4 = arith.constant 0 : index
    %2 = vector.load %arg3[%c0_3, %c0_4] : memref<1x20xi32, #tpu.memory_space<vmem>>, vector<1x20xi32>
    %3 = vector.extract_strided_slice %1 {offsets = [0, 0], sizes = [8, 1], strides = [1, 1]} : vector<8x2xi32> to vector<8x1xi32>
    %4 = vector.extract_strided_slice %1 {offsets = [0, 1], sizes = [8, 1], strides = [1, 1]} : vector<8x2xi32> to vector<8x1xi32>
    %5 = tpu.iota {dimensions = array<i32: 1>} : vector<8x20xi32>
    %c8_i32 = arith.constant 8 : i32
    %6 = arith.muli %arg0, %c8_i32 : i32
    %7 = tpu.iota {dimensions = array<i32: 0>} : vector<8x1xi32>
    %8 = vector.broadcast %6 : i32 to vector<8x1xi32>
    %9 = arith.addi %8, %7 : vector<8x1xi32>
    %c8_i32_5 = arith.constant 8 : i32
    %10 = vector.broadcast %c8_i32_5 : i32 to vector<8x1xi32>
    %11 = arith.cmpi slt, %9, %10 : vector<8x1xi32>
    %12 = vector.broadcast %2 : vector<1x20xi32> to vector<8x20xi32>
    %13 = vector.broadcast %4 : vector<8x1xi32> to vector<8x20xi32>
    %14 = arith.cmpi eq, %12, %13 : vector<8x20xi32>
    %15 = vector.broadcast %11 : vector<8x1xi1> to vector<8x20xi1>
    %16 = arith.andi %14, %15 : vector<8x20xi1>
    %17 = vector.broadcast %3 : vector<8x1xi32> to vector<8x20xi32>
    %18 = arith.cmpi eq, %5, %17 : vector<8x20xi32>
    %19 = vector.broadcast %11 : vector<8x1xi1> to vector<8x20xi1>
    %20 = arith.andi %18, %19 : vector<8x20xi1>
    %cst = arith.constant -1.000000e+30 : f32
    %21 = vector.broadcast %cst : f32 to vector<8x20xf32>
    %22 = arith.select %16, %0, %21 : vector<8x20xi1>, vector<8x20xf32>
    %cst_6 = arith.constant dense<0xFF800000> : vector<8xf32>
    %23 = vector.multi_reduction <maximumf>, %22, %cst_6 [1] : vector<8x20xf32> to vector<8xf32>
    %24 = vector.shape_cast %23 : vector<8xf32> to vector<8x1xf32>
    %25 = vector.broadcast %24 : vector<8x1xf32> to vector<8x20xf32>
    %26 = arith.subf %22, %25 : vector<8x20xf32>
    %27 = math.exp %26 : vector<8x20xf32>
    %cst_7 = arith.constant dense<0.000000e+00> : vector<8xf32>
    %28 = vector.multi_reduction <add>, %27, %cst_7 [1] : vector<8x20xf32> to vector<8xf32>
    %29 = vector.shape_cast %28 : vector<8xf32> to vector<8x1xf32>
    %cst_8 = arith.constant 0.000000e+00 : f32
    %30 = vector.broadcast %cst_8 : f32 to vector<8x20xf32>
    %31 = arith.select %20, %27, %30 : vector<8x20xi1>, vector<8x20xf32>
    %cst_9 = arith.constant dense<0.000000e+00> : vector<8xf32>
    %32 = vector.multi_reduction <add>, %31, %cst_9 [1] : vector<8x20xf32> to vector<8xf32>
    %33 = vector.shape_cast %32 : vector<8xf32> to vector<8x1xf32>
    %34 = arith.subf %29, %33 : vector<8x1xf32>
    %cst_10 = arith.constant 1.000000e-07 : f32
    %35 = vector.broadcast %cst_10 : f32 to vector<8x1xf32>
    %36 = arith.mulf %35, %29 : vector<8x1xf32>
    %37 = arith.addf %34, %36 : vector<8x1xf32>
    %38 = tpu.reciprocal %37 : vector<8x1xf32> -> vector<8x1xf32>
    %39 = math.log %37 : vector<8x1xf32>
    %40 = vector.broadcast %38 : vector<8x1xf32> to vector<8x20xf32>
    %41 = arith.mulf %27, %40 : vector<8x20xf32>
    %42 = vector.broadcast %39 : vector<8x1xf32> to vector<8x20xf32>
    %43 = arith.subf %26, %42 : vector<8x20xf32>
    %44 = arith.xori %16, %20 : vector<8x20xi1>
    %45 = arith.mulf %41, %43 : vector<8x20xf32>
    %cst_11 = arith.constant 0.000000e+00 : f32
    %46 = vector.broadcast %cst_11 : f32 to vector<8x20xf32>
    %47 = arith.select %44, %45, %46 : vector<8x20xi1>, vector<8x20xf32>
    %48 = vector.shape_cast %47 : vector<8x20xf32> to vector<1x8x20xf32>
    %cst_12 = arith.constant dense<0.000000e+00> : vector<1xf32>
    %49 = vector.multi_reduction <add>, %48, %cst_12 [1, 2] : vector<1x8x20xf32> to vector<1xf32>
    %50 = vector.shape_cast %49 : vector<1xf32> to vector<1x1x1xf32>
    %51 = vector.extract %50[0, 0, 0] : f32 from vector<1x1x1xf32>
    %cst_13 = arith.constant 1.000000e+00 : f32
    %52 = vector.broadcast %cst_13 : f32 to vector<1x8x128xf32>
    %53 = vector.broadcast %51 : f32 to vector<1x8x128xf32>
    %54 = arith.mulf %53, %52 : vector<1x8x128xf32>
    %c0_14 = arith.constant 0 : index
    %c0_15 = arith.constant 0 : index
    %c0_16 = arith.constant 0 : index
    %55 = vector.load %arg4[%c0_14, %c0_15, %c0_16] : memref<1x8x128xf32, #tpu.memory_space<vmem>>, vector<1x8x128xf32>
    tpu.vector_store %arg4[%c0_14, %c0_15, %c0_16], %54 {strides = array<i32>} : memref<1x8x128xf32, #tpu.memory_space<vmem>>, vector<1x8x128xf32>,
    return
  }
  func.func @transform_0(%arg0: i32) -> (i32, i32) {
    %c0_i32 = arith.constant 0 : i32
    %c0_i32_0 = arith.constant 0 : i32
    return %arg0, %c0_i32 : i32, i32
  }
  func.func @transform_1(%arg0: i32) -> (i32, i32) {
    %c0_i32 = arith.constant 0 : i32
    %c0_i32_0 = arith.constant 0 : i32
    return %arg0, %c0_i32 : i32, i32
  }
  func.func @transform_2(%arg0: i32) -> (i32, i32) {
    %c0_i32 = arith.constant 0 : i32
    %c0_i32_0 = arith.constant 0 : i32
    %c0_i32_1 = arith.constant 0 : i32
    return %c0_i32, %c0_i32_0 : i32, i32
  }
  func.func @transform_3(%arg0: i32) -> (i32, i32, i32) {
    %c0_i32 = arith.constant 0 : i32
    %c0_i32_0 = arith.constant 0 : i32
    %c0_i32_1 = arith.constant 0 : i32
    return %arg0, %c0_i32, %c0_i32_0 : i32, i32, i32
  }
}

</mosaic_0001>

<llo_original>
// kernel: tpu_custom_call.1
$region0: #{tpu_custom_call.1}
  #allocation0 [shape = 'u32[]', space=smem, size = 0x4, offset = 0x4, fixed_abs, tag = 'smem constant byte address 0x4 - core index']
  #allocation1 [shape = 'u32[144,128]{1,0:T(1,128)}', space=vmem, size = 0x12000, scoped, tag = 'internal scratch']
  %s0 = inlined_call_operand.vmem [shape: f32[8,20], index: 0, kind: input, shape index: {}]
  %s1 = inlined_call_operand.vmem [shape: s32[8,2], index: 1, kind: input, shape index: {}]
  %s2 = inlined_call_operand.vmem [shape: s32[1,20], index: 2, kind: input, shape index: {}]
  %s3 = inlined_call_operand.hbm [shape: f32[1,8,128], index: 3, kind: output, shape index: {}]
  %s4 = sld [smem:[#allocation0]]
  $region22: #{tpu_custom_call.1} parent=0
    _
  %s6 = ssub.s32 1, %s4
  %s7 = scalar_select 0, %s6, %s4
  $region1: #{tpu_custom_call.1} parent=0
    #allocation2 [shape = 'u8[4096]{0}', space=vmem, size = 0x1000, scoped, tag = 'output window, operand 0, single buffered']
    #allocation3 [shape = 's32[1]{0}', space=sflag, size = 0x4, scoped, tag = 'scoped memory for tpu_custom_call.1']
    %8 = vsyncpa [#allocation3], 0
    // Predicated region
    $region2: #{tpu_custom_call.1} parent=1 // pred_check
      _
    $region3: #{tpu_custom_call.1} parent=1 // pred_check_branch
      %10 = sbr.rel (0) target = $region5
    $region4: #{tpu_custom_call.1} parent=1 // pred_region
      _
    $region5: #{tpu_custom_call.1} parent=1 // pred_fallthru
      _
    // Predicated region
    $region6: #{tpu_custom_call.1} parent=1 // pred_check
      _
    $region7: #{tpu_custom_call.1} parent=1 // pred_check_branch
      %12 = sbr.rel (0) target = $region9
    $region8: #{tpu_custom_call.1} parent=1 // pred_region
      _
    $region9: #{tpu_custom_call.1} parent=1 // pred_fallthru
      _
    // Predicated region
    $region10: #{tpu_custom_call.1} parent=1 // pred_check
      _
    $region11: #{tpu_custom_call.1} parent=1 // pred_check_branch
      %14 = sbr.rel (0) target = $region13
    $region12: #{tpu_custom_call.1} parent=1 // pred_region
      _
    $region13: #{tpu_custom_call.1} parent=1 // pred_fallthru
      _
    %v15 = vld [vmem:[%s0] sm:$0xff]
    %v16 = vld [vmem:[%s1] sm:$0xff]
    %v17 = vld [vmem:[%s2] sm:$0x1]
    %v18 = vlaneseq
    %v19 = vand.u32 %v18, 127
    %s20 = smul.u32 0, 8
    %v21 = vlaneseq
    %v22 = vshrl.u32 %v21, 7
    %v23 = vstv %s20
    %v24 = vadd.s32 %v23, %v22
    %vm25 = vcmp.lt.s32.totalorder %v24, 8
    %v26 = vlaneseq
    %v27 = vshrl.u32 %v26, 7
    %v28 = vsub.s32 0, %v27
    %v29 = vrot.slane %v17, %v28
    %30 = vset.pattern.permute.xlu0 1
    %31 = vperm.xlu0 %30, %v16
    %v32 = vpop.permute.xlu0 %31
    %vm33 = vcmp.eq.s32.totalorder %v29, %v32
    %v34 = vsel %vm25, 1, 0
    %vm35 = vcmp.eq.s32.totalorder %v34, 1
    %vm36 = vmand %vm33, %vm35
    %37 = vset.pattern.permute.xlu0 0
    %38 = vperm.xlu0 %37, %v16
    %v39 = vpop.permute.xlu0 %38
    %vm40 = vcmp.eq.s32.totalorder %v19, %v39
    %vm41 = vmand %vm40, %vm35
    %v42 = vsel %vm36, %v15, -1e+30
    %vm43 = vcmask 162816
    %v44 = vsel %vm43, %v42, -inf
    %45 = vmax.xlane.f32.xlu0 %v44
    %v46 = vpop.xlane.xlu0 %45
    %v47 = vsub.f32 %v42, %v46
    %v48 = vmul.f32 %v47, 1.442695
    %v49 = vpow.pop %v48
    %v50 = vsel %vm43, %v49, 0.0
    %51 = vadd.xlane.f32.xlu0 %v50
    %v52 = vpop.xlane.xlu0 %51
    %v53 = vsel %vm41, %v49, 0.0
    %v54 = vsel %vm43, %v53, 0.0
    %55 = vadd.xlane.f32.xlu0 %v54
    %v56 = vpop.xlane.xlu0 %55
    %v57 = vsub.f32 %v52, %v56
    %v58 = vmul.f32 %v52, 1e-07
    %v59 = vadd.f32 %v57, %v58
    %v60 = vrcp.pop %v59
    %v61 = vlog2.pop %v59
    %v62 = vmul.f32 %v61, 0.6931472
    %v63 = vmul.f32 %v49, %v60
    %v64 = vsub.f32 %v47, %v62
    %vm65 = vmxor %vm36, %vm41
    %v66 = vmul.f32 %v63, %v64
    %v67 = vsel %vm65, %v66, 0.0
    %v68 = vsel %vm43, %v67, 0.0
    %69 = vadd.xlane.f32.xlu0 %v68
    %v70 = vpop.xlane.xlu0 %69
    %v71 = vrot.slane %v70, 4
    %v72 = vadd.f32 %v70, %v71
    %v73 = vrot.slane %v72, 2
    %v74 = vadd.f32 %v72, %v73
    %v75 = vrot.slane %v74, 1
    %v76 = vadd.f32 %v74, %v75
    %s77 = vtos %v76
    %v78 = vstv %s77
    %79 = vst [vmem:[#allocation2] sm:$0xff] %v78
    // Predicated region
    $region14: #{tpu_custom_call.1} parent=1 // pred_check
      _
    $region15: #{tpu_custom_call.1} parent=1 // pred_check_branch
      %81 = sbr.rel (0) target = $region17
    $region16: #{tpu_custom_call.1} parent=1 // pred_region
      %s83 = ssub.s32 128, 128
      %84 = vsyncadd [#allocation3], %s83
      %s86 = sshll.u32 [#allocation2], 4
      %s87 = int_to_ptr.vmem [resolvable:$true] %s86
      %89 = dma.vmem_to_hbm [thread:$0]  %s87, 128, %s3, [#allocation3]
    $region17: #{tpu_custom_call.1} parent=1 // pred_fallthru
      _
    // Predicated region
    $region18: #{tpu_custom_call.1} parent=1 // pred_check
      _
    $region19: #{tpu_custom_call.1} parent=1 // pred_check_branch
      %91 = sbr.rel (0) target = $region21
    $region20: #{tpu_custom_call.1} parent=1 // pred_region
      %92 = dma.done [#allocation3], 128
    $region21: #{tpu_custom_call.1} parent=1 // pred_fallthru
      _
    %93 = vsyncpa [#allocation3], 1

</llo_original>
